<compile_context>
chip_gen: v7x
topology: tpu7x:2x2x1
jax: 0.10.0
libtpu: 0.0.40
codegen_flags: <defaults>
</compile_context>

<pallas_src>
import jax
import jax.numpy as jnp
from jax import lax
from jax.experimental import pallas as pl
from jax.experimental.pallas import tpu as pltpu

EPS = 1e-5


def _bn_kernel(x_ref, w_ref, b_ref, o_ref, *, inv_l, eps):
    # x_ref: (L, TC) slab block; w_ref/b_ref: (1, TC)
    x = x_ref[...].astype(jnp.float32)

    # One-pass per-channel batch statistics over the sublane (L) axis.
    s = jnp.sum(x, axis=0, keepdims=True)              # (1, TC)
    ss = jnp.sum(x * x, axis=0, keepdims=True)          # (1, TC)
    mean = s * inv_l
    var = ss * inv_l - mean * mean                       # biased variance (training mode)
    inv_std = lax.rsqrt(var + eps)

    # Fused affine: y = x * scale + shift
    scale = w_ref[...].astype(jnp.float32) * inv_std     # (1, TC)
    shift = b_ref[...].astype(jnp.float32) - mean * scale
    o_ref[...] = (x * scale + shift).astype(o_ref.dtype)


def batchnorm2d(x, weight, bias, *, eps=EPS, block_c=256):
    """x: (N, C, H, W); weight/bias: (C,). Returns training-mode BN output (N, C, H, W)."""
    N, C, H, W = x.shape
    L = N * H * W

    # Channels-last slab: (L, C). (Tiny tensor; the wrapper transpose is layout plumbing.)
    x2d = jnp.transpose(x, (0, 2, 3, 1)).reshape(L, C)

    # Pad channels up to a multiple of the lane-block (block_c is a multiple of 128).
    c_pad = pl.cdiv(C, block_c) * block_c
    pad = c_pad - C
    if pad:
        x2d = jnp.pad(x2d, ((0, 0), (0, pad)))
        w_p = jnp.pad(weight, (0, pad))
        b_p = jnp.pad(bias, (0, pad))
    else:
        w_p, b_p = weight, bias
    w2d = w_p.reshape(1, c_pad)
    b2d = b_p.reshape(1, c_pad)

    kernel = lambda xr, wr, br, orr: _bn_kernel(xr, wr, br, orr, inv_l=1.0 / L, eps=eps)

    out2d = pl.pallas_call(
        kernel,
        out_shape=jax.ShapeDtypeStruct((L, c_pad), x.dtype),
        grid_spec=pltpu.PrefetchScalarGridSpec(
            num_scalar_prefetch=0,
            grid=(c_pad // block_c,),
            in_specs=[
                pl.BlockSpec((L, block_c), lambda i: (0, i)),
                pl.BlockSpec((1, block_c), lambda i: (0, i)),
                pl.BlockSpec((1, block_c), lambda i: (0, i)),
            ],
            out_specs=pl.BlockSpec((L, block_c), lambda i: (0, i)),
        ),
        compiler_params=pltpu.CompilerParams(
            dimension_semantics=("parallel",),
        ),
    )(x2d, w2d, b2d)

    out2d = out2d[:, :C]
    return jnp.transpose(out2d.reshape(N, H, W, C), (0, 3, 1, 2))


if __name__ == "__main__":
    key = jax.random.PRNGKey(0)
    kx, kw, kb = jax.random.split(key, 3)

    N, C, H, W = 1, 888, 7, 7  # matches BatchNorm2d(888) applied to [1, 888, 7, 7]
    x = jax.random.normal(kx, (N, C, H, W), dtype=jnp.float32)
    # Deterministic non-trivial affine parameters with BatchNorm2d(888) shapes.
    weight = 1.0 + 0.1 * jax.random.normal(kw, (C,), dtype=jnp.float32)
    bias = 0.1 * jax.random.normal(kb, (C,), dtype=jnp.float32)

    out = batchnorm2d(x, weight, bias)
    out = jax.block_until_ready(out)

    # Reference check in plain JAX (training-mode batch norm, biased variance).
    mean = jnp.mean(x, axis=(0, 2, 3), keepdims=True)
    var = jnp.mean((x - mean) ** 2, axis=(0, 2, 3), keepdims=True)
    ref = (x - mean) / jnp.sqrt(var + EPS) * weight[None, :, None, None] + bias[None, :, None, None]
    assert out.shape == (N, C, H, W)
    assert jnp.allclose(out, ref, atol=1e-4, rtol=1e-4)

    print("KERNEL_OK")
</pallas_src>

<mosaic_0001>
module attributes {stable_mosaic.version = 11 : i64} {
  func.func @_lambda_(%arg0: i32, %arg1: memref<49x256xf32, #tpu.memory_space<vmem>>, %arg2: memref<1x256xf32, #tpu.memory_space<vmem>>, %arg3: memref<1x256xf32, #tpu.memory_space<vmem>>, %arg4: memref<49x256xf32, #tpu.memory_space<vmem>>) attributes {dimension_semantics = [#tpu.dimension_semantics<parallel>], iteration_bounds = array<i64: 4>, scalar_prefetch = 0 : i64, scratch_operands = 0 : i64, tpu.core_type = #tpu.core_type<tc>, window_params = [{transform_indices = @transform_0, window_bounds = array<i64: 49, 256>}, {transform_indices = @transform_1, window_bounds = array<i64: 1, 256>}, {transform_indices = @transform_2, window_bounds = array<i64: 1, 256>}, {transform_indices = @transform_3, window_bounds = array<i64: 49, 256>}]} {
    %c0 = arith.constant 0 : index
    %c0_0 = arith.constant 0 : index
    %0 = vector.load %arg1[%c0, %c0_0] : memref<49x256xf32, #tpu.memory_space<vmem>>, vector<49x256xf32>
    %cst = arith.constant dense<0.000000e+00> : vector<256xf32>
    %1 = vector.multi_reduction <add>, %0, %cst [0] : vector<49x256xf32> to vector<256xf32>
    %2 = vector.shape_cast %1 : vector<256xf32> to vector<1x256xf32>
    %3 = arith.mulf %0, %0 : vector<49x256xf32>
    %cst_1 = arith.constant dense<0.000000e+00> : vector<256xf32>
    %4 = vector.multi_reduction <add>, %3, %cst_1 [0] : vector<49x256xf32> to vector<256xf32>
    %5 = vector.shape_cast %4 : vector<256xf32> to vector<1x256xf32>
    %cst_2 = arith.constant 0.0204081628 : f32
    %6 = vector.broadcast %cst_2 : f32 to vector<1x256xf32>
    %7 = arith.mulf %2, %6 : vector<1x256xf32>
    %cst_3 = arith.constant 0.0204081628 : f32
    %8 = vector.broadcast %cst_3 : f32 to vector<1x256xf32>
    %9 = arith.mulf %5, %8 : vector<1x256xf32>
    %10 = arith.mulf %7, %7 : vector<1x256xf32>
    %11 = arith.subf %9, %10 : vector<1x256xf32>
    %cst_4 = arith.constant 9.99999974E-6 : f32
    %12 = vector.broadcast %cst_4 : f32 to vector<1x256xf32>
    %13 = arith.addf %11, %12 : vector<1x256xf32>
    %14 = math.rsqrt %13 : vector<1x256xf32>
    %c0_5 = arith.constant 0 : index
    %c0_6 = arith.constant 0 : index
    %15 = vector.load %arg2[%c0_5, %c0_6] : memref<1x256xf32, #tpu.memory_space<vmem>>, vector<1x256xf32>
    %16 = arith.mulf %15, %14 : vector<1x256xf32>
    %c0_7 = arith.constant 0 : index
    %c0_8 = arith.constant 0 : index
    %17 = vector.load %arg3[%c0_7, %c0_8] : memref<1x256xf32, #tpu.memory_space<vmem>>, vector<1x256xf32>
    %18 = arith.mulf %7, %16 : vector<1x256xf32>
    %19 = arith.subf %17, %18 : vector<1x256xf32>
    %20 = vector.broadcast %16 : vector<1x256xf32> to vector<49x256xf32>
    %21 = arith.mulf %0, %20 : vector<49x256xf32>
    %22 = vector.broadcast %19 : vector<1x256xf32> to vector<49x256xf32>
    %23 = arith.addf %21, %22 : vector<49x256xf32>
    %c0_9 = arith.constant 0 : index
    %c0_10 = arith.constant 0 : index
    %24 = vector.load %arg4[%c0_9, %c0_10] : memref<49x256xf32, #tpu.memory_space<vmem>>, vector<49x256xf32>
    tpu.vector_store %arg4[%c0_9, %c0_10], %23 {strides = array<i32>} : memref<49x256xf32, #tpu.memory_space<vmem>>, vector<49x256xf32>,
    return
  }
  func.func @transform_0(%arg0: i32) -> (i32, i32) {
    %c0_i32 = arith.constant 0 : i32
    %c0_i32_0 = arith.constant 0 : i32
    return %c0_i32, %arg0 : i32, i32
  }
  func.func @transform_1(%arg0: i32) -> (i32, i32) {
    %c0_i32 = arith.constant 0 : i32
    %c0_i32_0 = arith.constant 0 : i32
    return %c0_i32, %arg0 : i32, i32
  }
  func.func @transform_2(%arg0: i32) -> (i32, i32) {
    %c0_i32 = arith.constant 0 : i32
    %c0_i32_0 = arith.constant 0 : i32
    return %c0_i32, %arg0 : i32, i32
  }
  func.func @transform_3(%arg0: i32) -> (i32, i32) {
    %c0_i32 = arith.constant 0 : i32
    %c0_i32_0 = arith.constant 0 : i32
    return %c0_i32, %arg0 : i32, i32
  }
}

</mosaic_0001>

<llo_original>
// kernel: tpu_custom_call.1
$region0: #{tpu_custom_call.1}
  #allocation0 [shape = 'u32[]', space=smem, size = 0x4, offset = 0x4, fixed_abs, tag = 'smem constant byte address 0x4 - core index']
  #allocation1 [shape = 'u32[144,128]{1,0:T(1,128)}', space=vmem, size = 0x12000, scoped, tag = 'internal scratch']
  %s0 = inlined_call_operand.hbm [shape: f32[49,1024], index: 0, kind: input, shape index: {}]
  %s1 = inlined_call_operand.hbm [shape: f32[1,1024], index: 1, kind: input, shape index: {}]
  %s2 = inlined_call_operand.hbm [shape: f32[1,1024], index: 2, kind: input, shape index: {}]
  %s3 = inlined_call_operand.hbm [shape: f32[49,1024], index: 3, kind: output, shape index: {}]
  %s4 = sld [smem:[#allocation0]]
  $region57: #{tpu_custom_call.1} parent=0
    _
  %s6 = ssub.s32 1, %s4
  %s7 = scalar_select 0, %s6, %s4
  $region1: #{tpu_custom_call.1} parent=0
    #allocation2 [shape = 'u8[114688]{0}', space=vmem, size = 0x1c000, scoped, tag = 'input window, operand 0']
    #allocation3 [shape = 's32[2]{0}', space=sflag, size = 0x8, scoped, tag = 'scoped memory for tpu_custom_call.1']
    #allocation4 [shape = 's32[2]{0}', space=sflag, size = 0x8, scoped, tag = 'scoped memory for tpu_custom_call.1']
    #allocation5 [shape = 'u8[2048]{0}', space=vmem, size = 0x800, scoped, tag = 'input window, operand 1']
    #allocation6 [shape = 's32[2]{0}', space=sflag, size = 0x8, scoped, tag = 'scoped memory for tpu_custom_call.1']
    #allocation7 [shape = 'u8[2048]{0}', space=vmem, size = 0x800, scoped, tag = 'input window, operand 2']
    #allocation8 [shape = 'u8[114688]{0}', space=vmem, size = 0x1c000, scoped, tag = 'output window, operand 0']
    %8 = vsyncpa [#allocation3], 0
    %s9 = scalar_lea.sflag [#allocation3], 1
    %10 = vsyncpa %s9, 0
    %11 = vsyncpa [#allocation6], 0
    %s12 = scalar_lea.sflag [#allocation6], 1
    %13 = vsyncpa %s12, 0
    %14 = vsyncpa [#allocation4], 0
    %s15 = scalar_lea.sflag [#allocation4], 1
    %16 = vsyncpa %s15, 0
    loop: start=0, step=1, limit=6
    $region2: #{tpu_custom_call.1} parent=1 // loop_pre_header
      _
    $region3: #{tpu_custom_call.1} parent=1 // loop_header
      %s18 = sphi 0, %s22
      %p19 = scmp.ge.s32.totalorder %s18, 6
      %s28 = sphi 0, %s30
      %s31 = sphi 0, %s28
      %s32 = sphi 0, %s31
      %s48 = sphi 0, %s32
      %s54 = sphi 0, %s56
      %s57 = sphi 0, %s54
      %s58 = sphi 0, %s57
      %s74 = sphi 0, %s58
      %s80 = sphi 0, %s82
      %s83 = sphi 0, %s80
      %s84 = sphi 0, %s83
      %s100 = sphi 0, %s84
      %s106 = sphi 0, %s108
      %s109 = sphi 0, %s106
      %s110 = sphi 0, %s109
      %s126 = sphi 0, %s110
    $region4: #{tpu_custom_call.1} parent=1 // loop_header_branch
      %21 = sbr.rel (%p19) target = $region8
    $region5: #{tpu_custom_call.1} parent=1 // loop_body
      %s23 = ssub.s32 %s18, 1
      %s24 = ssub.s32 %s18, 2
      %s25 = sadd.s32 %s18, 1
      %s26 = ssub.s32 %s18, %s25
      %p27 = scmp.eq.s32.totalorder %s26, 0
      %s29 = sadd.s32 %s28, 1
      %s30 = scalar_select %p27, %s28, %s29
      %p33 = pneg %p27
      %p34 = scmp.eq.s32.totalorder %s18, 3
      %p35 = por %p33, %p34
      %p36 = scmp.ne.s32.totalorder %s28, %s31
      %p37 = scmp.eq.s32.totalorder %s18, 0
      %p38 = por %p36, %p37
      %p39 = scmp.ne.s32.totalorder %s28, %s31
      %p40 = scmp.eq.s32.totalorder %s23, 3
      %p41 = por %p39, %p40
      %p42 = scmp.ne.s32.totalorder %s31, %s32
      %p43 = scmp.eq.s32.totalorder %s23, 0
      %p44 = por %p42, %p43
      %p45 = scmp.ne.s32.totalorder %s31, %s32
      %p46 = scmp.eq.s32.totalorder %s24, 3
      %p47 = por %p45, %p46
      %p49 = scmp.ne.s32.totalorder %s32, %s48
      %p50 = scmp.eq.s32.totalorder %s24, 0
      %p51 = por %p49, %p50
      %s52 = ssub.s32 %s18, %s25
      %p53 = scmp.eq.s32.totalorder %s52, 0
      %s55 = sadd.s32 %s54, 1
      %s56 = scalar_select %p53, %s54, %s55
      %p59 = pneg %p53
      %p60 = scmp.eq.s32.totalorder %s18, 3
      %p61 = por %p59, %p60
      %p62 = scmp.ne.s32.totalorder %s54, %s57
      %p63 = scmp.eq.s32.totalorder %s18, 0
      %p64 = por %p62, %p63
      %p65 = scmp.ne.s32.totalorder %s54, %s57
      %p66 = scmp.eq.s32.totalorder %s23, 3
      %p67 = por %p65, %p66
      %p68 = scmp.ne.s32.totalorder %s57, %s58
      %p69 = scmp.eq.s32.totalorder %s23, 0
      %p70 = por %p68, %p69
      %p71 = scmp.ne.s32.totalorder %s57, %s58
      %p72 = scmp.eq.s32.totalorder %s24, 3
      %p73 = por %p71, %p72
      %p75 = scmp.ne.s32.totalorder %s58, %s74
      %p76 = scmp.eq.s32.totalorder %s24, 0
      %p77 = por %p75, %p76
      %s78 = ssub.s32 %s18, %s25
      %p79 = scmp.eq.s32.totalorder %s78, 0
      %s81 = sadd.s32 %s80, 1
      %s82 = scalar_select %p79, %s80, %s81
      %p85 = pneg %p79
      %p86 = scmp.eq.s32.totalorder %s18, 3
      %p87 = por %p85, %p86
      %p88 = scmp.ne.s32.totalorder %s80, %s83
      %p89 = scmp.eq.s32.totalorder %s18, 0
      %p90 = por %p88, %p89
      %p91 = scmp.ne.s32.totalorder %s80, %s83
      %p92 = scmp.eq.s32.totalorder %s23, 3
      %p93 = por %p91, %p92
      %p94 = scmp.ne.s32.totalorder %s83, %s84
      %p95 = scmp.eq.s32.totalorder %s23, 0
      %p96 = por %p94, %p95
      %p97 = scmp.ne.s32.totalorder %s83, %s84
      %p98 = scmp.eq.s32.totalorder %s24, 3
      %p99 = por %p97, %p98
      %p101 = scmp.ne.s32.totalorder %s84, %s100
      %p102 = scmp.eq.s32.totalorder %s24, 0
      %p103 = por %p101, %p102
      %s104 = ssub.s32 %s18, %s25
      %p105 = scmp.eq.s32.totalorder %s104, 0
      %s107 = sadd.s32 %s106, 1
      %s108 = scalar_select %p105, %s106, %s107
      %p111 = pneg %p105
      %p112 = scmp.eq.s32.totalorder %s18, 3
      %p113 = por %p111, %p112
      %p114 = scmp.ne.s32.totalorder %s106, %s109
      %p115 = scmp.eq.s32.totalorder %s18, 0
      %p116 = por %p114, %p115
      %p117 = scmp.ne.s32.totalorder %s106, %s109
      %p118 = scmp.eq.s32.totalorder %s23, 3
      %p119 = por %p117, %p118
      %p120 = scmp.ne.s32.totalorder %s109, %s110
      %p121 = scmp.eq.s32.totalorder %s23, 0
      %p122 = por %p120, %p121
      %p123 = scmp.ne.s32.totalorder %s109, %s110
      %p124 = scmp.eq.s32.totalorder %s24, 3
      %p125 = por %p123, %p124
      %p127 = scmp.ne.s32.totalorder %s110, %s126
      %p128 = scmp.eq.s32.totalorder %s24, 0
      %p129 = por %p127, %p128
      %p130 = scmp.le.s32.totalorder 1, %s18
      %p131 = scmp.lt.s32.totalorder %s18, 5
      %p132 = pnand %p130, %p131
      %p133 = pneg %p132
      // Predicated region
      $region9: #{tpu_custom_call.1} parent=5 // pred_check
        _
      $region10: #{tpu_custom_call.1} parent=5 // pred_check_branch
        %135 = sbr.rel (%p132) target = $region12
      $region11: #{tpu_custom_call.1} parent=5 // pred_region
        %s136 = ssub.s32 %s18, 1
      $region12: #{tpu_custom_call.1} parent=5 // pred_fallthru
        _
      %p137 = scmp.lt.s32.totalorder %s18, 4
      // Predicated region
      $region13: #{tpu_custom_call.1} parent=5 // pred_check
        %p138 = pneg %p137
      $region14: #{tpu_custom_call.1} parent=5 // pred_check_branch
        %140 = sbr.rel (%p138) target = $region16
      $region15: #{tpu_custom_call.1} parent=5 // pred_region
        // Predicated region
        $region17: #{tpu_custom_call.1} parent=15 // pred_check
          %p141 = pneg %p38
        $region18: #{tpu_custom_call.1} parent=15 // pred_check_branch
          %143 = sbr.rel (%p141) target = $region20
        $region19: #{tpu_custom_call.1} parent=15 // pred_region
          %s144 = sand.u32 %s28, 1
          %s145 = scalar_lea.sflag [#allocation3], %s144
          %s146 = sand.u32 %s28, 1
          %s147 = smul.addr %s146, 112
          %s148 = scalar_lea.vmem [#allocation2], %s147
          %s149 = smul.u32 2, %s18
          %s151 = ssub.s32 1792, 1792
          %152 = vsyncadd %s145, %s151
          %s153 = smul.addr %s149, 128
          %s154 = scalar_lea.hbm %s0, %s153
          %s155 = sshll.u32 %s148, 4
          %s156 = int_to_ptr.vmem [resolvable:$true] %s155
          %161 = dma.hbm_to_vmem [thread:$0]  %s154, 1792, %s156, %s145, 1024, 256, 16
        $region20: #{tpu_custom_call.1} parent=15 // pred_fallthru
          _
        // Predicated region
        $region21: #{tpu_custom_call.1} parent=15 // pred_check
          %p162 = pneg %p64
        $region22: #{tpu_custom_call.1} parent=15 // pred_check_branch
          %164 = sbr.rel (%p162) target = $region24
        $region23: #{tpu_custom_call.1} parent=15 // pred_region
          %s165 = sand.u32 %s18, 1
          %s166 = scalar_lea.sflag [#allocation6], %s165
          %s167 = sand.u32 %s54, 1
          %s168 = smul.addr %s167, 2
          %s169 = scalar_lea.vmem [#allocation5], %s168
          %s170 = smul.u32 2, %s18
          %s172 = ssub.s32 32, 32
          %173 = vsyncadd %s166, %s172
          %s174 = smul.addr %s170, 16
          %s175 = scalar_lea.hbm %s1, %s174
          %s177 = sshll.u32 %s169, 4
          %s178 = int_to_ptr.vmem [resolvable:$true] %s177
          %180 = dma.hbm_to_vmem [thread:$0]  %s175, 32, %s178, %s166
        $region24: #{tpu_custom_call.1} parent=15 // pred_fallthru
          _
        // Predicated region
        $region25: #{tpu_custom_call.1} parent=15 // pred_check
          %p181 = pneg %p90
        $region26: #{tpu_custom_call.1} parent=15 // pred_check_branch
          %183 = sbr.rel (%p181) target = $region28
        $region27: #{tpu_custom_call.1} parent=15 // pred_region
          %s184 = sand.u32 %s18, 1
          %s185 = scalar_lea.sflag [#allocation6], %s184
          %s186 = sand.u32 %s80, 1
          %s187 = smul.addr %s186, 2
          %s188 = scalar_lea.vmem [#allocation7], %s187
          %s189 = smul.u32 2, %s18
          %s191 = ssub.s32 32, 32
          %192 = vsyncadd %s185, %s191
          %s193 = smul.addr %s189, 16
          %s194 = scalar_lea.hbm %s2, %s193
          %s196 = sshll.u32 %s188, 4
          %s197 = int_to_ptr.vmem [resolvable:$true] %s196
          %199 = dma.hbm_to_vmem [thread:$0]  %s194, 32, %s197, %s185
        $region28: #{tpu_custom_call.1} parent=15 // pred_fallthru
          _
      $region16: #{tpu_custom_call.1} parent=5 // pred_fallthru
        _
      %p200 = scmp.le.s32.totalorder 1, %s18
      %p201 = scmp.lt.s32.totalorder %s18, 5
      %p202 = pnand %p200, %p201
      %p203 = pneg %p202
      // Predicated region
      $region29: #{tpu_custom_call.1} parent=5 // pred_check
        _
      $region30: #{tpu_custom_call.1} parent=5 // pred_check_branch
        %205 = sbr.rel (%p202) target = $region32
      $region31: #{tpu_custom_call.1} parent=5 // pred_region
        %s206 = ssub.s32 %s18, 1
        %s207 = sand.u32 %s31, 1
        %s208 = scalar_lea.sflag [#allocation3], %s207
        %s209 = sand.u32 %s31, 1
        %s210 = smul.addr %s209, 112
        %s211 = scalar_lea.vmem [#allocation2], %s210
        // Predicated region
        $region33: #{tpu_custom_call.1} parent=31 // pred_check
          %p212 = pneg %p44
        $region34: #{tpu_custom_call.1} parent=31 // pred_check_branch
          %214 = sbr.rel (%p212) target = $region36
        $region35: #{tpu_custom_call.1} parent=31 // pred_region
          %215 = dma.done %s208, 1792
        $region36: #{tpu_custom_call.1} parent=31 // pred_fallthru
          _
        %s216 = sand.u32 %s23, 1
        %s217 = scalar_lea.sflag [#allocation6], %s216
        %s218 = sand.u32 %s57, 1
        %s219 = smul.addr %s218, 2
        %s220 = scalar_lea.vmem [#allocation5], %s219
        // Predicated region
        $region37: #{tpu_custom_call.1} parent=31 // pred_check
          %p221 = pneg %p70
        $region38: #{tpu_custom_call.1} parent=31 // pred_check_branch
          %223 = sbr.rel (%p221) target = $region40
        $region39: #{tpu_custom_call.1} parent=31 // pred_region
          %224 = dma.done %s217, 32
        $region40: #{tpu_custom_call.1} parent=31 // pred_fallthru
          _
        %s225 = sand.u32 %s23, 1
        %s226 = scalar_lea.sflag [#allocation6], %s225
        %s227 = sand.u32 %s83, 1
        %s228 = smul.addr %s227, 2
        %s229 = scalar_lea.vmem [#allocation7], %s228
        // Predicated region
        $region41: #{tpu_custom_call.1} parent=31 // pred_check
          %p230 = pneg %p96
        $region42: #{tpu_custom_call.1} parent=31 // pred_check_branch
          %232 = sbr.rel (%p230) target = $region44
        $region43: #{tpu_custom_call.1} parent=31 // pred_region
          %233 = dma.done %s226, 32
        $region44: #{tpu_custom_call.1} parent=31 // pred_fallthru
          _
        %s234 = sand.u32 %s31, 1
        %s235 = scalar_lea.sflag [#allocation3], %s234
        %s236 = sand.u32 %s31, 1
        %s237 = smul.addr %s236, 112
        %s238 = scalar_lea.vmem [#allocation2], %s237
        %p239 = pneg %p44
        %p240 = pneg %p41
        %s241 = sand.u32 %s23, 1
        %s242 = scalar_lea.sflag [#allocation6], %s241
        %s243 = sand.u32 %s57, 1
        %s244 = smul.addr %s243, 2
        %s245 = scalar_lea.vmem [#allocation5], %s244
        %p246 = pneg %p70
        %p247 = pneg %p67
        %s248 = sand.u32 %s23, 1
        %s249 = scalar_lea.sflag [#allocation6], %s248
        %s250 = sand.u32 %s83, 1
        %s251 = smul.addr %s250, 2
        %s252 = scalar_lea.vmem [#allocation7], %s251
        %p253 = pneg %p96
        %p254 = pneg %p93
        %p255 = pneg %p122
        %p256 = pneg %p119
        %s257 = sand.u32 %s109, 1
        %s258 = scalar_lea.sflag [#allocation4], %s257
        %s259 = sand.u32 %s109, 1
        %s260 = smul.addr %s259, 112
        %s261 = scalar_lea.vmem [#allocation8], %s260
        %s262 = smul.u32 2, %s23
        %s263 = smul.u32 2, %s23
        %s264 = smul.u32 2, %s23
        %s265 = smul.u32 2, %s23
        %v266 = vld [vmem:[%s211] sm:$0xff]
        %v267 = vld [vmem:[%s211 + $0x8] sm:$0xff]
        %v268 = vld [vmem:[%s211 + $0x10] sm:$0xff]
        %v269 = vld [vmem:[%s211 + $0x18] sm:$0xff]
        %v270 = vld [vmem:[%s211 + $0x20] sm:$0xff]
        %v271 = vld [vmem:[%s211 + $0x28] sm:$0xff]
        %v272 = vld [vmem:[%s211 + $0x30] sm:$0xff]
        %v273 = vld [vmem:[%s211 + $0x38] sm:$0xff]
        %v274 = vld [vmem:[%s211 + $0x40] sm:$0xff]
        %v275 = vld [vmem:[%s211 + $0x48] sm:$0xff]
        %v276 = vld [vmem:[%s211 + $0x50] sm:$0xff]
        %v277 = vld [vmem:[%s211 + $0x58] sm:$0xff]
        %v278 = vld [vmem:[%s211 + $0x60] sm:$0x1]
        %v279 = vld [vmem:[%s211 + $0x68] sm:$0x1]
        %v280 = vadd.f32 %v266, %v268
        %v281 = vadd.f32 %v280, %v270
        %v282 = vadd.f32 %v281, %v272
        %v283 = vadd.f32 %v282, %v274
        %v284 = vadd.f32 %v283, %v276
        %vm285 = vcmask 1040384
        %v286 = vsel %vm285, %v278, 0.0
        %v287 = vadd.f32 %v284, %v286
        %v288 = vrot.slane %v287, 4
        %v289 = vadd.f32 %v287, %v288
        %v290 = vrot.slane %v289, 2
        %v291 = vadd.f32 %v289, %v290
        %v292 = vrot.slane %v291, 1
        %v293 = vadd.f32 %v291, %v292
        %v294 = vadd.f32 %v267, %v269
        %v295 = vadd.f32 %v294, %v271
        %v296 = vadd.f32 %v295, %v273
        %v297 = vadd.f32 %v296, %v275
        %v298 = vadd.f32 %v297, %v277
        %v299 = vsel %vm285, %v279, 0.0
        %v300 = vadd.f32 %v298, %v299
        %v301 = vrot.slane %v300, 4
        %v302 = vadd.f32 %v300, %v301
        %v303 = vrot.slane %v302, 2
        %v304 = vadd.f32 %v302, %v303
        %v305 = vrot.slane %v304, 1
        %v306 = vadd.f32 %v304, %v305
        %v307 = vmul.f32 %v266, %v266
        %v308 = vmul.f32 %v267, %v267
        %v309 = vmul.f32 %v268, %v268
        %v310 = vmul.f32 %v269, %v269
        %v311 = vmul.f32 %v270, %v270
        %v312 = vmul.f32 %v271, %v271
        %v313 = vmul.f32 %v272, %v272
        %v314 = vmul.f32 %v273, %v273
        %v315 = vmul.f32 %v274, %v274
        %v316 = vmul.f32 %v275, %v275
        %v317 = vmul.f32 %v276, %v276
        %v318 = vmul.f32 %v277, %v277
        %v319 = vmul.f32 %v278, %v278
        %v320 = vmul.f32 %v279, %v279
        %v321 = vadd.f32 %v307, %v309
        %v322 = vadd.f32 %v321, %v311
        %v323 = vadd.f32 %v322, %v313
        %v324 = vadd.f32 %v323, %v315
        %v325 = vadd.f32 %v324, %v317
        %v326 = vsel %vm285, %v319, 0.0
        %v327 = vadd.f32 %v325, %v326
        %v328 = vrot.slane %v327, 4
        %v329 = vadd.f32 %v327, %v328
        %v330 = vrot.slane %v329, 2
        %v331 = vadd.f32 %v329, %v330
        %v332 = vrot.slane %v331, 1
        %v333 = vadd.f32 %v331, %v332
        %v334 = vadd.f32 %v308, %v310
        %v335 = vadd.f32 %v334, %v312
        %v336 = vadd.f32 %v335, %v314
        %v337 = vadd.f32 %v336, %v316
        %v338 = vadd.f32 %v337, %v318
        %v339 = vsel %vm285, %v320, 0.0
        %v340 = vadd.f32 %v338, %v339
        %v341 = vrot.slane %v340, 4
        %v342 = vadd.f32 %v340, %v341
        %v343 = vrot.slane %v342, 2
        %v344 = vadd.f32 %v342, %v343
        %v345 = vrot.slane %v344, 1
        %v346 = vadd.f32 %v344, %v345
        %v347 = vmul.f32 %v293, 0.020408163
        %v348 = vmul.f32 %v306, 0.020408163
        %v349 = vmul.f32 %v333, 0.020408163
        %v350 = vmul.f32 %v346, 0.020408163
        %v351 = vmul.f32 %v347, %v347
        %v352 = vmul.f32 %v348, %v348
        %v353 = vsub.f32 %v349, %v351
        %v354 = vsub.f32 %v350, %v352
        %v355 = vadd.f32 %v353, 1e-05
        %v356 = vadd.f32 %v354, 1e-05
        %v357 = vrsqrt.pop %v355
        %v358 = vrsqrt.pop %v356
        %v359 = vld [vmem:[%s220] sm:$0x3]
        %v362 = vcombine.low %v357, %v358
        %v364 = vunpack.c.l.s4 1966171168
        %v365 = vunpack.c.0.s8 %v364
        %v366 = vlaneseq
        %v367 = vshrl.u32 %v366, 7
        %v368 = vsub.s32 %v365, %v367
        %v369 = vrot.slane %v362, %v368
        %v371 = vunpack.c.l.s4 1966171168
        %v372 = vunpack.c.0.s8 %v371
        %v373 = vlaneseq
        %v374 = vshrl.u32 %v373, 7
        %v375 = vsub.s32 %v372, %v374
        %v376 = vrot.slane %v369, %v375
        %v378 = vmul.f32 %v359, %v376
        %v379 = vld [vmem:[%s229] sm:$0x3]
        %v381 = vlaneseq
        %v382 = vshrl.u32 %v381, 7
        %v383 = vsub.s32 0, %v382
        %v384 = vrot.slane %v378, %v383
        %v385 = vlaneseq
        %v386 = vshrl.u32 %v385, 7
        %v387 = vsub.s32 1, %v386
        %v388 = vrot.slane %v378, %v387
        %v391 = vmul.f32 %v347, %v384
        %v392 = vmul.f32 %v348, %v388
        %v395 = vcombine.low %v391, %v392
        %v397 = vunpack.c.l.s4 1966171168
        %v398 = vunpack.c.0.s8 %v397
        %v399 = vlaneseq
        %v400 = vshrl.u32 %v399, 7
        %v401 = vsub.s32 %v398, %v400
        %v402 = vrot.slane %v395, %v401
        %v404 = vunpack.c.l.s4 1966171168
        %v405 = vunpack.c.0.s8 %v404
        %v406 = vlaneseq
        %v407 = vshrl.u32 %v406, 7
        %v408 = vsub.s32 %v405, %v407
        %v409 = vrot.slane %v402, %v408
        %v411 = vsub.f32 %v379, %v409
        %v412 = vmul.f32 %v266, %v384
        %v413 = vmul.f32 %v267, %v388
        %v414 = vmul.f32 %v268, %v384
        %v415 = vmul.f32 %v269, %v388
        %v416 = vmul.f32 %v270, %v384
        %v417 = vmul.f32 %v271, %v388
        %v418 = vmul.f32 %v272, %v384
        %v419 = vmul.f32 %v273, %v388
        %v420 = vmul.f32 %v274, %v384
        %v421 = vmul.f32 %v275, %v388
        %v422 = vmul.f32 %v276, %v384
        %v423 = vmul.f32 %v277, %v388
        %v424 = vmul.f32 %v278, %v384
        %v425 = vmul.f32 %v279, %v388
        %v427 = vlaneseq
        %v428 = vshrl.u32 %v427, 7
        %v429 = vsub.s32 0, %v428
        %v430 = vrot.slane %v411, %v429
        %v431 = vlaneseq
        %v432 = vshrl.u32 %v431, 7
        %v433 = vsub.s32 1, %v432
        %v434 = vrot.slane %v411, %v433
        %v437 = vadd.f32 %v412, %v430
        %v438 = vadd.f32 %v413, %v434
        %v439 = vadd.f32 %v414, %v430
        %v440 = vadd.f32 %v415, %v434
        %v441 = vadd.f32 %v416, %v430
        %v442 = vadd.f32 %v417, %v434
        %v443 = vadd.f32 %v418, %v430
        %v444 = vadd.f32 %v419, %v434
        %v445 = vadd.f32 %v420, %v430
        %v446 = vadd.f32 %v421, %v434
        %v447 = vadd.f32 %v422, %v430
        %v448 = vadd.f32 %v423, %v434
        %v449 = vadd.f32 %v424, %v430
        %v450 = vadd.f32 %v425, %v434
        %451 = vst [vmem:[%s261] sm:$0xff] %v437
        %452 = vst [vmem:[%s261 + $0x8] sm:$0xff] %v438
        %453 = vst [vmem:[%s261 + $0x10] sm:$0xff] %v439
        %454 = vst [vmem:[%s261 + $0x18] sm:$0xff] %v440
        %455 = vst [vmem:[%s261 + $0x20] sm:$0xff] %v441
        %456 = vst [vmem:[%s261 + $0x28] sm:$0xff] %v442
        %457 = vst [vmem:[%s261 + $0x30] sm:$0xff] %v443
        %458 = vst [vmem:[%s261 + $0x38] sm:$0xff] %v444
        %459 = vst [vmem:[%s261 + $0x40] sm:$0xff] %v445
        %460 = vst [vmem:[%s261 + $0x48] sm:$0xff] %v446
        %461 = vst [vmem:[%s261 + $0x50] sm:$0xff] %v447
        %462 = vst [vmem:[%s261 + $0x58] sm:$0xff] %v448
        %463 = vst [vmem:[%s261 + $0x60] sm:$0x1] %v449
        %464 = vst [vmem:[%s261 + $0x68] sm:$0x1] %v450
        %s465 = sand.u32 %s109, 1
        %s466 = scalar_lea.sflag [#allocation4], %s465
        %s467 = sand.u32 %s109, 1
        %s468 = smul.addr %s467, 112
        %s469 = scalar_lea.vmem [#allocation8], %s468
        // Predicated region
        $region45: #{tpu_custom_call.1} parent=31 // pred_check
          %p470 = pneg %p119
        $region46: #{tpu_custom_call.1} parent=31 // pred_check_branch
          %472 = sbr.rel (%p470) target = $region48
        $region47: #{tpu_custom_call.1} parent=31 // pred_region
          %s473 = smul.u32 2, %s23
          %s475 = ssub.s32 1792, 1792
          %476 = vsyncadd %s466, %s475
          %s477 = smul.addr %s473, 128
          %s478 = scalar_lea.hbm %s3, %s477
          %s479 = sshll.u32 %s469, 4
          %s480 = int_to_ptr.vmem [resolvable:$true] %s479
          %485 = dma.vmem_to_hbm [thread:$0]  %s480, 1792, %s478, %s466, 256, 1024, 16
        $region48: #{tpu_custom_call.1} parent=31 // pred_fallthru
          _
      $region32: #{tpu_custom_call.1} parent=5 // pred_fallthru
        _
      %p486 = scmp.le.s32.totalorder 2, %s18
      // Predicated region
      $region49: #{tpu_custom_call.1} parent=5 // pred_check
        %p487 = pneg %p486
      $region50: #{tpu_custom_call.1} parent=5 // pred_check_branch
        %489 = sbr.rel (%p487) target = $region52
      $region51: #{tpu_custom_call.1} parent=5 // pred_region
        %s490 = ssub.s32 %s18, 2
        // Predicated region
        $region53: #{tpu_custom_call.1} parent=51 // pred_check
          %p491 = pneg %p125
        $region54: #{tpu_custom_call.1} parent=51 // pred_check_branch
          %493 = sbr.rel (%p491) target = $region56
        $region55: #{tpu_custom_call.1} parent=51 // pred_region
          %s494 = sand.u32 %s110, 1
          %s495 = scalar_lea.sflag [#allocation4], %s494
          %s496 = sand.u32 %s110, 1
          %s497 = smul.addr %s496, 112
          %s498 = scalar_lea.vmem [#allocation8], %s497
          %499 = dma.done %s495, 1792
        $region56: #{tpu_custom_call.1} parent=51 // pred_fallthru
          _
      $region52: #{tpu_custom_call.1} parent=5 // pred_fallthru
        _
    $region6: #{tpu_custom_call.1} parent=1 // loop_footer
      %s22 = sadd.s32 1, %s18
    $region7: #{tpu_custom_call.1} parent=1 // loop_footer_branch
      %17 = sbr.rel target = $region3
    $region8: #{tpu_custom_call.1} parent=1 // loop_exit
      _
    %500 = vsyncpa [#allocation3], 1
    %s501 = scalar_lea.sflag [#allocation3], 1
    %502 = vsyncpa %s501, 1
    %503 = vsyncpa [#allocation6], 1
    %s504 = scalar_lea.sflag [#allocation6], 1
    %505 = vsyncpa %s504, 1
    %506 = vsyncpa [#allocation4], 1
    %s507 = scalar_lea.sflag [#allocation4], 1
    %508 = vsyncpa %s507, 1

</llo_original>
